<compile_context>
chip_gen: v7x
topology: tpu7x:2x2x1
jax: 0.10.0
libtpu: 0.0.40
codegen_flags: <defaults>
</compile_context>

<pallas_src>
import jax
import jax.numpy as jnp
from jax.experimental import pallas as pl
from jax.experimental.pallas import tpu as pltpu


def _round_up(x, m):
    return (x + m - 1) // m * m


def _ngram_kernel(ids_ref, fused_ref, b1_ref, w2_ref, b2_ref, out_ref):
    # ids_ref:   (TN, 1)   int32 token ids for this row tile
    # fused_ref: (Vp, H)   bf16  precomputed Embedding @ W1^T (zero-padded rows)
    # b1_ref:    (1, H)    f32   linear1 bias
    # w2_ref:    (H, Vp)   bf16  linear2 weight, transposed (zero-padded cols)
    # b2_ref:    (1, Vp)   f32   linear2 bias (-1e30 in padded vocab cols)
    # out_ref:   (TN, Vp)  log-probabilities (padded cols sliced off by wrapper)
    tn = ids_ref.shape[0]
    v_pad = fused_ref.shape[0]

    # Fused embedding gather + linear1: one_hot(ids) @ (E @ W1^T) on the MXU.
    # one-hot is exact in bf16 (values 0/1), accumulation is f32.
    ids = ids_ref[...]                                            # (TN, 1)
    iota = jax.lax.broadcasted_iota(jnp.int32, (tn, v_pad), 1)    # (TN, Vp)
    one_hot = (iota == ids).astype(jnp.bfloat16)

    h = jnp.dot(one_hot, fused_ref[...],
                preferred_element_type=jnp.float32) + b1_ref[...]  # (TN, H) f32
    h = jnp.maximum(h, 0.0)                                        # relu

    # linear2 (bf16 MXU operands, f32 accumulate).
    logits = jnp.dot(h.astype(jnp.bfloat16), w2_ref[...],
                     preferred_element_type=jnp.float32) + b2_ref[...]

    # log_softmax over the (padded) vocab axis; padded columns have -1e30 bias,
    # so they never win the max and contribute exp(-huge) == 0 to the sum.
    m = jnp.max(logits, axis=1, keepdims=True)
    shifted = logits - m
    lse = jnp.log(jnp.sum(jnp.exp(shifted), axis=1, keepdims=True))
    out_ref[...] = (shifted - lse).astype(out_ref.dtype)


def prepare_params(emb_table, w1, b1, w2, b2):
    """One-time parameter prep (fuse / transpose / pad / cast), off the call path.

    PyTorch layouts in: emb (V, D), w1 (128, D), b1 (128,), w2 (V, 128), b2 (V,).
    """
    vocab, emb_dim = emb_table.shape
    hidden = w1.shape[0]
    assert hidden % 128 == 0, "module fixes hidden=128; kernel assumes lane-dense hidden"
    v_pad = _round_up(vocab, 128)    # lane-dense vocab axis

    # Algebraic fusion of Embedding and Linear1 (no nonlinearity in between):
    #   E[ids] @ W1^T == one_hot(ids) @ (E @ W1^T)      (computed once, in f32)
    fused = emb_table.astype(jnp.float32) @ w1.T.astype(jnp.float32)     # (V, H)
    fused_pad = (jnp.zeros((v_pad, hidden), jnp.float32)
                 .at[:vocab, :].set(fused).astype(jnp.bfloat16))

    b1_2d = b1.reshape(1, hidden).astype(jnp.float32)
    w2_t = (jnp.zeros((hidden, v_pad), jnp.float32)
            .at[:, :vocab].set(w2.T.astype(jnp.float32)).astype(jnp.bfloat16))
    # Padded vocab columns get a huge negative bias so log_softmax ignores them.
    b2_2d = jnp.full((1, v_pad), -1e30, jnp.float32).at[0, :vocab].set(
        b2.astype(jnp.float32))
    return {"fused": fused_pad, "b1": b1_2d, "w2": w2_t, "b2": b2_2d, "vocab": vocab}


def _vmem_capacity_bytes():
    try:
        info = pltpu.get_tpu_info()
        cap = getattr(info, "vmem_capacity_bytes", None)
        if cap:
            return int(cap)
    except Exception:
        pass
    return 64 * 1024 * 1024   # conservative default (v7x per-core VMEM)


def _per_tile_bytes(tn, v_pad, hidden, out_bytes):
    io = 2 * (tn * 4) + 2 * (tn * v_pad * out_bytes)   # double-buffered ids + output
    interm = tn * v_pad * 6 + tn * hidden * 6          # one_hot(bf16)+logits(f32), h(f32+bf16)
    return io + interm


def _auto_tile_n(n, v_pad, hidden, resident_bytes, out_bytes, tile_n, vmem_cap):
    """Row tile: multiple of 16 (bf16 sublane packing), as large as VMEM allows."""
    tn = max(16, min(_round_up(tile_n, 16), _round_up(n, 16)))
    budget = vmem_cap * 3 // 4   # headroom for compiler scratch / semaphores
    while tn > 16 and resident_bytes + _per_tile_bytes(tn, v_pad, hidden, out_bytes) > budget:
        tn = max(16, (tn // 2) // 16 * 16)
    return tn


def ngram_forward(token_ids, params, *, tile_n=512, out_dtype=jnp.float32):
    """Forward pass: token_ids (N,) int -> (N, vocab) log-probs (out_dtype)."""
    fused, b1_2d, w2_t, b2_2d = params["fused"], params["b1"], params["w2"], params["b2"]
    vocab = params["vocab"]
    v_pad, hidden = fused.shape
    out_bytes = jnp.dtype(out_dtype).itemsize

    n = token_ids.shape[0]
    # Resident (single-buffered) weight footprint.
    resident = int(fused.size * 2 + b1_2d.size * 4 + w2_t.size * 2 + b2_2d.size * 4)
    vmem_cap = _vmem_capacity_bytes()
    tn = _auto_tile_n(n, v_pad, hidden, resident, out_bytes, tile_n, vmem_cap)
    n_pad = _round_up(n, tn)
    ids = jnp.zeros((n_pad, 1), jnp.int32).at[:n, 0].set(token_ids.astype(jnp.int32))

    # VMEM budget derived from the actual footprint (not a hard-coded constant).
    need = resident + _per_tile_bytes(tn, v_pad, hidden, out_bytes)
    vmem_limit = int(max(16 << 20, min(need + (8 << 20), vmem_cap - (4 << 20))))

    # Advisory cost estimate for XLA's scheduler around the custom call.
    flops = 4 * n_pad * v_pad * hidden            # two bf16 MXU matmuls per row
    transcendentals = n_pad * (v_pad + 1)         # exp over logits + log of the sum
    bytes_accessed = int(resident + ids.size * 4 + n_pad * v_pad * out_bytes)

    def resident_spec(shape):
        # Grid-invariant operand: single-buffered (no pointless double-buffering).
        return pl.BlockSpec(shape, lambda i: (0, 0), pipeline_mode=pl.Buffered(1))

    out = pl.pallas_call(
        _ngram_kernel,
        out_shape=jax.ShapeDtypeStruct((n_pad, v_pad), out_dtype),
        grid=(n_pad // tn,),
        in_specs=[
            pl.BlockSpec((tn, 1), lambda i: (i, 0)),   # token ids: tiled over N
            resident_spec((v_pad, hidden)),            # fused E @ W1^T (bf16, resident)
            resident_spec((1, hidden)),                # b1
            resident_spec((hidden, v_pad)),            # W2^T (bf16, resident)
            resident_spec((1, v_pad)),                 # b2 (-1e30 in padded cols)
        ],
        out_specs=pl.BlockSpec((tn, v_pad), lambda i: (i, 0)),
        compiler_params=pltpu.CompilerParams(
            dimension_semantics=("parallel",),          # independent row tiles
            vmem_limit_bytes=vmem_limit,
        ),
        cost_estimate=pl.CostEstimate(flops=int(flops),
                                      transcendentals=int(transcendentals),
                                      bytes_accessed=bytes_accessed),
    )(ids, fused, b1_2d, w2_t, b2_2d)

    # TODO(synk): for vocab beyond a few thousand, add a vocab grid axis with an
    # online (flash-style) logsumexp over W2/b2/out tiles and replace the one-hot
    # gather with an HBM-resident table + scalar-prefetched per-row DMA gather.
    return out[:n, :vocab]


def reference_forward(token_ids, emb_table, w1, b1, w2, b2):
    x = jnp.take(emb_table, token_ids, axis=0)
    h = jax.nn.relu(x @ w1.T + b1)
    logits = h @ w2.T + b2
    return jax.nn.log_softmax(logits, axis=1)


if __name__ == "__main__":
    vocab_size = 64
    embedding_dim = 32
    hidden = 128
    n_tokens = 8

    key = jax.random.PRNGKey(0)
    k_emb, k_w1, k_b1, k_w2, k_b2, k_ids = jax.random.split(key, 6)

    # Deterministic parameter init (shapes match nn.Embedding / nn.Linear).
    emb_table = jax.random.normal(k_emb, (vocab_size, embedding_dim), jnp.float32)
    lim1 = 1.0 / jnp.sqrt(embedding_dim)
    w1 = jax.random.uniform(k_w1, (hidden, embedding_dim), jnp.float32, -lim1, lim1)
    b1 = jax.random.uniform(k_b1, (hidden,), jnp.float32, -lim1, lim1)
    lim2 = 1.0 / jnp.sqrt(hidden)
    w2 = jax.random.uniform(k_w2, (vocab_size, hidden), jnp.float32, -lim2, lim2)
    b2 = jax.random.uniform(k_b2, (vocab_size,), jnp.float32, -lim2, lim2)

    token_ids = jax.random.randint(k_ids, (n_tokens,), 0, vocab_size, jnp.int32)

    params = prepare_params(emb_table, w1, b1, w2, b2)   # one-time prep
    out = ngram_forward(token_ids, params)
    out = jax.block_until_ready(out)

    ref = reference_forward(token_ids, emb_table, w1, b1, w2, b2)
    assert out.shape == (n_tokens, vocab_size)
    # bf16 MXU operands / bf16 fused table (f32 accumulate) -> compare against the
    # f32 reference with a correspondingly loose absolute tolerance.
    assert jnp.allclose(out, ref, atol=3e-2, rtol=0.0), float(jnp.max(jnp.abs(out - ref)))

    print("KERNEL_OK")
</pallas_src>

<mosaic_0001>
module attributes {stable_mosaic.version = 11 : i64} {
  func.func @_ngram_kernel(%arg0: i32, %arg1: memref<16x1xi32, #tpu.memory_space<vmem>>, %arg2: memref<128x128xbf16, #tpu.memory_space<vmem>>, %arg3: memref<1x128xf32, #tpu.memory_space<vmem>>, %arg4: memref<128x128xbf16, #tpu.memory_space<vmem>>, %arg5: memref<1x128xf32, #tpu.memory_space<vmem>>, %arg6: memref<16x128xf32, #tpu.memory_space<vmem>>) attributes {dimension_semantics = [#tpu.dimension_semantics<parallel>], iteration_bounds = array<i64: 1>, scalar_prefetch = 0 : i64, scratch_operands = 0 : i64, tpu.core_type = #tpu.core_type<tc>, window_params = [{transform_indices = @transform_0, window_bounds = array<i64: 16, 1>}, {pipeline_mode = #tpu.pipeline_mode<synchronous>, transform_indices = @transform_1, window_bounds = array<i64: 128, 128>}, {pipeline_mode = #tpu.pipeline_mode<synchronous>, transform_indices = @transform_2, window_bounds = array<i64: 1, 128>}, {pipeline_mode = #tpu.pipeline_mode<synchronous>, transform_indices = @transform_3, window_bounds = array<i64: 128, 128>}, {pipeline_mode = #tpu.pipeline_mode<synchronous>, transform_indices = @transform_4, window_bounds = array<i64: 1, 128>}, {transform_indices = @transform_5, window_bounds = array<i64: 16, 128>}]} {
    %c0 = arith.constant 0 : index
    %c0_0 = arith.constant 0 : index
    %0 = vector.load %arg1[%c0, %c0_0] : memref<16x1xi32, #tpu.memory_space<vmem>>, vector<16x1xi32>
    %1 = tpu.iota {dimensions = array<i32: 1>} : vector<16x128xi32>
    %2 = vector.broadcast %0 : vector<16x1xi32> to vector<16x128xi32>
    %3 = arith.cmpi eq, %1, %2 : vector<16x128xi32>
    %4 = arith.extui %3 : vector<16x128xi1> to vector<16x128xi32>
    %5 = arith.sitofp %4 : vector<16x128xi32> to vector<16x128xf32>
    %6 = arith.truncf %5 : vector<16x128xf32> to vector<16x128xbf16>
    %c0_1 = arith.constant 0 : index
    %c0_2 = arith.constant 0 : index
    %7 = vector.load %arg2[%c0_1, %c0_2] : memref<128x128xbf16, #tpu.memory_space<vmem>>, vector<128x128xbf16>
    %cst = arith.constant dense<0.000000e+00> : vector<16x128xf32>
    %8 = tpu.matmul %6, %7, %cst {dimension_numbers = #tpu.dot_dimension_numbers<[1], [0], [0], [1], [0, 0, 1, 1], [], []>} : vector<16x128xbf16>, vector<128x128xbf16>, vector<16x128xf32> -> vector<16x128xf32>
    %c0_3 = arith.constant 0 : index
    %c0_4 = arith.constant 0 : index
    %9 = vector.load %arg3[%c0_3, %c0_4] : memref<1x128xf32, #tpu.memory_space<vmem>>, vector<1x128xf32>
    %10 = vector.broadcast %9 : vector<1x128xf32> to vector<16x128xf32>
    %11 = arith.addf %8, %10 : vector<16x128xf32>
    %cst_5 = arith.constant 0.000000e+00 : f32
    %12 = vector.broadcast %cst_5 : f32 to vector<16x128xf32>
    %13 = arith.maximumf %11, %12 : vector<16x128xf32>
    %14 = arith.truncf %13 : vector<16x128xf32> to vector<16x128xbf16>
    %c0_6 = arith.constant 0 : index
    %c0_7 = arith.constant 0 : index
    %15 = vector.load %arg4[%c0_6, %c0_7] : memref<128x128xbf16, #tpu.memory_space<vmem>>, vector<128x128xbf16>
    %cst_8 = arith.constant dense<0.000000e+00> : vector<16x128xf32>
    %16 = tpu.matmul %14, %15, %cst_8 {dimension_numbers = #tpu.dot_dimension_numbers<[1], [0], [0], [1], [0, 0, 1, 1], [], []>} : vector<16x128xbf16>, vector<128x128xbf16>, vector<16x128xf32> -> vector<16x128xf32>
    %c0_9 = arith.constant 0 : index
    %c0_10 = arith.constant 0 : index
    %17 = vector.load %arg5[%c0_9, %c0_10] : memref<1x128xf32, #tpu.memory_space<vmem>>, vector<1x128xf32>
    %18 = vector.broadcast %17 : vector<1x128xf32> to vector<16x128xf32>
    %19 = arith.addf %16, %18 : vector<16x128xf32>
    %cst_11 = arith.constant dense<0xFF800000> : vector<16xf32>
    %20 = vector.multi_reduction <maximumf>, %19, %cst_11 [1] : vector<16x128xf32> to vector<16xf32>
    %21 = vector.shape_cast %20 : vector<16xf32> to vector<16x1xf32>
    %22 = vector.broadcast %21 : vector<16x1xf32> to vector<16x128xf32>
    %23 = arith.subf %19, %22 : vector<16x128xf32>
    %24 = math.exp %23 : vector<16x128xf32>
    %cst_12 = arith.constant dense<0.000000e+00> : vector<16xf32>
    %25 = vector.multi_reduction <add>, %24, %cst_12 [1] : vector<16x128xf32> to vector<16xf32>
    %26 = vector.shape_cast %25 : vector<16xf32> to vector<16x1xf32>
    %27 = math.log %26 : vector<16x1xf32>
    %28 = vector.broadcast %27 : vector<16x1xf32> to vector<16x128xf32>
    %29 = arith.subf %23, %28 : vector<16x128xf32>
    %c0_13 = arith.constant 0 : index
    %c0_14 = arith.constant 0 : index
    %30 = vector.load %arg6[%c0_13, %c0_14] : memref<16x128xf32, #tpu.memory_space<vmem>>, vector<16x128xf32>
    tpu.vector_store %arg6[%c0_13, %c0_14], %29 {strides = array<i32>} : memref<16x128xf32, #tpu.memory_space<vmem>>, vector<16x128xf32>,
    return
  }
  func.func @transform_0(%arg0: i32) -> (i32, i32) {
    %c0_i32 = arith.constant 0 : i32
    %c0_i32_0 = arith.constant 0 : i32
    return %arg0, %c0_i32 : i32, i32
  }
  func.func @transform_1(%arg0: i32) -> (i32, i32) {
    %c0_i32 = arith.constant 0 : i32
    %c0_i32_0 = arith.constant 0 : i32
    %c0_i32_1 = arith.constant 0 : i32
    return %c0_i32, %c0_i32_0 : i32, i32
  }
  func.func @transform_2(%arg0: i32) -> (i32, i32) {
    %c0_i32 = arith.constant 0 : i32
    %c0_i32_0 = arith.constant 0 : i32
    %c0_i32_1 = arith.constant 0 : i32
    return %c0_i32, %c0_i32_0 : i32, i32
  }
  func.func @transform_3(%arg0: i32) -> (i32, i32) {
    %c0_i32 = arith.constant 0 : i32
    %c0_i32_0 = arith.constant 0 : i32
    %c0_i32_1 = arith.constant 0 : i32
    return %c0_i32, %c0_i32_0 : i32, i32
  }
  func.func @transform_4(%arg0: i32) -> (i32, i32) {
    %c0_i32 = arith.constant 0 : i32
    %c0_i32_0 = arith.constant 0 : i32
    %c0_i32_1 = arith.constant 0 : i32
    return %c0_i32, %c0_i32_0 : i32, i32
  }
  func.func @transform_5(%arg0: i32) -> (i32, i32) {
    %c0_i32 = arith.constant 0 : i32
    %c0_i32_0 = arith.constant 0 : i32
    return %arg0, %c0_i32 : i32, i32
  }
}

</mosaic_0001>

<llo_original>
// kernel: tpu_custom_call.1
$region0: #{tpu_custom_call.1}
  #allocation0 [shape = 'u32[]', space=smem, size = 0x4, offset = 0x4, fixed_abs, tag = 'smem constant byte address 0x4 - core index']
  #allocation1 [shape = 'u32[144,128]{1,0:T(1,128)}', space=vmem, size = 0x12000, scoped, tag = 'internal scratch']
  %s0 = inlined_call_operand.vmem [shape: s32[16,1], index: 0, kind: input, shape index: {}]
  %s1 = inlined_call_operand.hbm [shape: bf16[128,128], index: 1, kind: input, shape index: {}]
  %s2 = inlined_call_operand.vmem [shape: f32[1,128], index: 2, kind: input, shape index: {}]
  %s3 = inlined_call_operand.hbm [shape: bf16[128,128], index: 3, kind: input, shape index: {}]
  %s4 = inlined_call_operand.vmem [shape: f32[1,128], index: 4, kind: input, shape index: {}]
  %s5 = inlined_call_operand.hbm [shape: f32[16,128], index: 5, kind: output, shape index: {}]
  %s6 = sld [smem:[#allocation0]]
  $region38: #{tpu_custom_call.1} parent=0
    _
  %s8 = ssub.s32 1, %s6
  %s9 = scalar_select 0, %s8, %s6
  $region1: #{tpu_custom_call.1} parent=0
    #allocation2 [shape = 'u8[32768]{0}', space=vmem, size = 0x8000, scoped, tag = 'input window, operand 1, single buffered']
    #allocation3 [shape = 's32[1]{0}', space=sflag, size = 0x4, scoped, tag = 'scoped memory for tpu_custom_call.1']
    #allocation4 [shape = 's32[1]{0}', space=sflag, size = 0x4, scoped, tag = 'scoped memory for tpu_custom_call.1']
    #allocation5 [shape = 'u8[32768]{0}', space=vmem, size = 0x8000, scoped, tag = 'input window, operand 3, single buffered']
    #allocation6 [shape = 's32[1]{0}', space=sflag, size = 0x4, scoped, tag = 'scoped memory for tpu_custom_call.1']
    #allocation7 [shape = 'u8[8192]{0}', space=vmem, size = 0x2000, scoped, tag = 'output window, operand 0, single buffered']
    %10 = vsyncpa [#allocation3], 0
    %11 = vsyncpa [#allocation6], 0
    %12 = vsyncpa [#allocation4], 0
    // Predicated region
    $region2: #{tpu_custom_call.1} parent=1 // pred_check
      _
    $region3: #{tpu_custom_call.1} parent=1 // pred_check_branch
      %14 = sbr.rel (0) target = $region5
    $region4: #{tpu_custom_call.1} parent=1 // pred_region
      _
    $region5: #{tpu_custom_call.1} parent=1 // pred_fallthru
      _
    // Predicated region
    $region6: #{tpu_custom_call.1} parent=1 // pred_check
      _
    $region7: #{tpu_custom_call.1} parent=1 // pred_check_branch
      %16 = sbr.rel (0) target = $region9
    $region8: #{tpu_custom_call.1} parent=1 // pred_region
      %s18 = ssub.s32 1024, 1024
      %19 = vsyncadd [#allocation3], %s18
      %s20 = sshll.u32 [#allocation2], 4
      %s21 = int_to_ptr.vmem [resolvable:$true] %s20
      %26 = dma.hbm_to_vmem [thread:$0]  %s1, 1024, %s21, [#allocation3], 64, 64, 4
    $region9: #{tpu_custom_call.1} parent=1 // pred_fallthru
      _
    // Predicated region
    $region10: #{tpu_custom_call.1} parent=1 // pred_check
      _
    $region11: #{tpu_custom_call.1} parent=1 // pred_check_branch
      %28 = sbr.rel (0) target = $region13
    $region12: #{tpu_custom_call.1} parent=1 // pred_region
      _
    $region13: #{tpu_custom_call.1} parent=1 // pred_fallthru
      _
    // Predicated region
    $region14: #{tpu_custom_call.1} parent=1 // pred_check
      _
    $region15: #{tpu_custom_call.1} parent=1 // pred_check_branch
      %30 = sbr.rel (0) target = $region17
    $region16: #{tpu_custom_call.1} parent=1 // pred_region
      %s32 = ssub.s32 1024, 1024
      %33 = vsyncadd [#allocation6], %s32
      %s34 = sshll.u32 [#allocation5], 4
      %s35 = int_to_ptr.vmem [resolvable:$true] %s34
      %40 = dma.hbm_to_vmem [thread:$0]  %s3, 1024, %s35, [#allocation6], 64, 64, 4
    $region17: #{tpu_custom_call.1} parent=1 // pred_fallthru
      _
    // Predicated region
    $region18: #{tpu_custom_call.1} parent=1 // pred_check
      _
    $region19: #{tpu_custom_call.1} parent=1 // pred_check_branch
      %42 = sbr.rel (0) target = $region21
    $region20: #{tpu_custom_call.1} parent=1 // pred_region
      _
    $region21: #{tpu_custom_call.1} parent=1 // pred_fallthru
      _
    // Predicated region
    $region22: #{tpu_custom_call.1} parent=1 // pred_check
      _
    $region23: #{tpu_custom_call.1} parent=1 // pred_check_branch
      %44 = sbr.rel (0) target = $region25
    $region24: #{tpu_custom_call.1} parent=1 // pred_region
      %45 = dma.done [#allocation3], 1024
    $region25: #{tpu_custom_call.1} parent=1 // pred_fallthru
      _
    // Predicated region
    $region26: #{tpu_custom_call.1} parent=1 // pred_check
      _
    $region27: #{tpu_custom_call.1} parent=1 // pred_check_branch
      %47 = sbr.rel (0) target = $region29
    $region28: #{tpu_custom_call.1} parent=1 // pred_region
      %48 = dma.done [#allocation6], 1024
    $region29: #{tpu_custom_call.1} parent=1 // pred_fallthru
      _
    %v50 = vld [vmem:[%s0] sm:$0xff]
    %v51 = vld [vmem:[%s0 + $0x8] sm:$0xff]
    %v52 = vlaneseq
    %v53 = vand.u32 %v52, 127
    %54 = vset.pattern.permute.xlu0 0
    %55 = vperm.xlu0 %54, %v50
    %v56 = vpop.permute.xlu0 %55
    %57 = vset.pattern.permute.xlu0 0
    %58 = vperm.xlu0 %57, %v51
    %v59 = vpop.permute.xlu0 %58
    %vm60 = vcmp.eq.s32.totalorder %v53, %v56
    %vm61 = vcmp.eq.s32.totalorder %v53, %v59
    %v62 = vsel %vm60, 1, 0
    %v63 = vsel %vm61, 1, 0
    %v64 = vcvt.s32.f32 %v62
    %v65 = vcvt.s32.f32 %v63
    %v66 = vpack.c.bf16 %v65, %v64
    %v67 = vld [vmem:[#allocation2] sm:$0xf]
    %v68 = vld [vmem:[#allocation2 + $0x4] sm:$0xf]
    %v69 = vld [vmem:[#allocation2 + $0x8] sm:$0xf]
    %v70 = vld [vmem:[#allocation2 + $0xc] sm:$0xf]
    %v71 = vld [vmem:[#allocation2 + $0x10] sm:$0xf]
    %v72 = vld [vmem:[#allocation2 + $0x14] sm:$0xf]
    %v73 = vld [vmem:[#allocation2 + $0x18] sm:$0xf]
    %v74 = vld [vmem:[#allocation2 + $0x1c] sm:$0xf]
    %v75 = vld [vmem:[#allocation2 + $0x20] sm:$0xf]
    %v76 = vld [vmem:[#allocation2 + $0x24] sm:$0xf]
    %v77 = vld [vmem:[#allocation2 + $0x28] sm:$0xf]
    %v78 = vld [vmem:[#allocation2 + $0x2c] sm:$0xf]
    %v79 = vld [vmem:[#allocation2 + $0x30] sm:$0xf]
    %v80 = vld [vmem:[#allocation2 + $0x34] sm:$0xf]
    %v81 = vld [vmem:[#allocation2 + $0x38] sm:$0xf]
    %v82 = vld [vmem:[#allocation2 + $0x3c] sm:$0xf]
    %v83 = vld [vmem:[%s2] sm:$0x1]
    %v85 = vlaneseq
    %v86 = vshrl.u32 %v85, 7
    %v87 = vsub.s32 0, %v86
    %v88 = vrot.slane %v83, %v87
    %v106 = vunpack.c.l.b16 %v67
    %v107 = vunpack.c.l.b16 %v68
    %v108 = vunpack.c.l.b16 %v69
    %v109 = vunpack.c.l.b16 %v70
    %v110 = vunpack.c.l.b16 %v71
    %v111 = vunpack.c.l.b16 %v72
    %v112 = vunpack.c.l.b16 %v73
    %v113 = vunpack.c.l.b16 %v74
    %v114 = vunpack.c.l.b16 %v75
    %v115 = vunpack.c.l.b16 %v76
    %v116 = vunpack.c.l.b16 %v77
    %v117 = vunpack.c.l.b16 %v78
    %v118 = vunpack.c.l.b16 %v79
    %v119 = vunpack.c.l.b16 %v80
    %v120 = vunpack.c.l.b16 %v81
    %v121 = vunpack.c.l.b16 %v82
    %v122 = vpack.c.b16 %v107, %v106
    %v123 = vpack.c.b16 %v109, %v108
    %v124 = vpack.c.b16 %v111, %v110
    %v125 = vpack.c.b16 %v113, %v112
    %v126 = vpack.c.b16 %v115, %v114
    %v127 = vpack.c.b16 %v117, %v116
    %v128 = vpack.c.b16 %v119, %v118
    %v129 = vpack.c.b16 %v121, %v120
    %138 = vmatprep.subr.bf16.mxu0 0
    %139 = vmatpush1.bf16.msra.mxu0 %v122
    %140 = vmatprep.subr.bf16.mxu0 0
    %141 = vmatpush1.bf16.msra.mxu0 %v123
    %142 = vmatprep.subr.bf16.mxu0 0
    %143 = vmatpush1.bf16.msra.mxu0 %v124
    %144 = vmatprep.subr.bf16.mxu0 0
    %145 = vmatpush1.bf16.msra.mxu0 %v125
    %146 = vmatprep.subr.bf16.mxu0 0
    %147 = vmatpush1.bf16.msra.mxu0 %v126
    %148 = vmatprep.subr.bf16.mxu0 0
    %149 = vmatpush1.bf16.msra.mxu0 %v127
    %150 = vmatprep.subr.bf16.mxu0 0
    %151 = vmatpush1.bf16.msra.mxu0 %v128
    %152 = vmatprep.subr.bf16.mxu0 0
    %153 = vmatpush1.bf16.msra.mxu0 %v129
    %154 = vmatprep.subr.bf16.mxu0 0
    %155 = vmatpush1.bf16.msra.mxu0 0
    %156 = vmatprep.subr.bf16.mxu0 0
    %157 = vmatpush1.bf16.msra.mxu0 0
    %158 = vmatprep.subr.bf16.mxu0 0
    %159 = vmatpush1.bf16.msra.mxu0 0
    %160 = vmatprep.subr.bf16.mxu0 0
    %161 = vmatpush1.bf16.msra.mxu0 0
    %162 = vmatprep.subr.bf16.mxu0 0
    %163 = vmatpush1.bf16.msra.mxu0 0
    %164 = vmatprep.subr.bf16.mxu0 0
    %165 = vmatpush1.bf16.msra.mxu0 0
    %166 = vmatprep.subr.bf16.mxu0 0
    %167 = vmatpush1.bf16.msra.mxu0 0
    %168 = vmatprep.subr.bf16.mxu0 0
    %169 = vmatpush1.bf16.msra.mxu0 0
    %170 = vmatprep.mubr.bf16.mxu0 0
    %171 = vmatmul.mubr.bf16.gmra.mrb[0].mxu0 %v66
    %v172 = vpop.f32.mrb[0].mxu0
    %v173 = vadd.f32 %v88, %v172
    %v174 = vpop.f32.mrb[0].mxu0
    %v175 = vpop.f32.mrb[0].mxu0
    %v176 = vadd.f32 %v88, %v175
    %v177 = vpop.f32.mrb[0].mxu0
    %178 = vdwg.mxu0
    %v179 = vmax.f32 %v173, 0.0
    %v180 = vmax.f32 %v176, 0.0
    %v181 = vpack.c.bf16 %v180, %v179
    %v182 = vld [vmem:[#allocation5] sm:$0xf]
    %v183 = vld [vmem:[#allocation5 + $0x4] sm:$0xf]
    %v184 = vld [vmem:[#allocation5 + $0x8] sm:$0xf]
    %v185 = vld [vmem:[#allocation5 + $0xc] sm:$0xf]
    %v186 = vld [vmem:[#allocation5 + $0x10] sm:$0xf]
    %v187 = vld [vmem:[#allocation5 + $0x14] sm:$0xf]
    %v188 = vld [vmem:[#allocation5 + $0x18] sm:$0xf]
    %v189 = vld [vmem:[#allocation5 + $0x1c] sm:$0xf]
    %v190 = vld [vmem:[#allocation5 + $0x20] sm:$0xf]
    %v191 = vld [vmem:[#allocation5 + $0x24] sm:$0xf]
    %v192 = vld [vmem:[#allocation5 + $0x28] sm:$0xf]
    %v193 = vld [vmem:[#allocation5 + $0x2c] sm:$0xf]
    %v194 = vld [vmem:[#allocation5 + $0x30] sm:$0xf]
    %v195 = vld [vmem:[#allocation5 + $0x34] sm:$0xf]
    %v196 = vld [vmem:[#allocation5 + $0x38] sm:$0xf]
    %v197 = vld [vmem:[#allocation5 + $0x3c] sm:$0xf]
    %v198 = vld [vmem:[%s4] sm:$0x1]
    %v200 = vlaneseq
    %v201 = vshrl.u32 %v200, 7
    %v202 = vsub.s32 0, %v201
    %v203 = vrot.slane %v198, %v202
    %v221 = vunpack.c.l.b16 %v182
    %v222 = vunpack.c.l.b16 %v183
    %v223 = vunpack.c.l.b16 %v184
    %v224 = vunpack.c.l.b16 %v185
    %v225 = vunpack.c.l.b16 %v186
    %v226 = vunpack.c.l.b16 %v187
    %v227 = vunpack.c.l.b16 %v188
    %v228 = vunpack.c.l.b16 %v189
    %v229 = vunpack.c.l.b16 %v190
    %v230 = vunpack.c.l.b16 %v191
    %v231 = vunpack.c.l.b16 %v192
    %v232 = vunpack.c.l.b16 %v193
    %v233 = vunpack.c.l.b16 %v194
    %v234 = vunpack.c.l.b16 %v195
    %v235 = vunpack.c.l.b16 %v196
    %v236 = vunpack.c.l.b16 %v197
    %v237 = vpack.c.b16 %v222, %v221
    %v238 = vpack.c.b16 %v224, %v223
    %v239 = vpack.c.b16 %v226, %v225
    %v240 = vpack.c.b16 %v228, %v227
    %v241 = vpack.c.b16 %v230, %v229
    %v242 = vpack.c.b16 %v232, %v231
    %v243 = vpack.c.b16 %v234, %v233
    %v244 = vpack.c.b16 %v236, %v235
    %253 = vmatprep.subr.bf16.mxu0 0
    %254 = vmatpush1.bf16.msra.mxu0 %v237
    %255 = vmatprep.subr.bf16.mxu0 0
    %256 = vmatpush1.bf16.msra.mxu0 %v238
    %257 = vmatprep.subr.bf16.mxu0 0
    %258 = vmatpush1.bf16.msra.mxu0 %v239
    %259 = vmatprep.subr.bf16.mxu0 0
    %260 = vmatpush1.bf16.msra.mxu0 %v240
    %261 = vmatprep.subr.bf16.mxu0 0
    %262 = vmatpush1.bf16.msra.mxu0 %v241
    %263 = vmatprep.subr.bf16.mxu0 0
    %264 = vmatpush1.bf16.msra.mxu0 %v242
    %265 = vmatprep.subr.bf16.mxu0 0
    %266 = vmatpush1.bf16.msra.mxu0 %v243
    %267 = vmatprep.subr.bf16.mxu0 0
    %268 = vmatpush1.bf16.msra.mxu0 %v244
    %269 = vmatprep.subr.bf16.mxu0 0
    %270 = vmatpush1.bf16.msra.mxu0 0
    %271 = vmatprep.subr.bf16.mxu0 0
    %272 = vmatpush1.bf16.msra.mxu0 0
    %273 = vmatprep.subr.bf16.mxu0 0
    %274 = vmatpush1.bf16.msra.mxu0 0
    %275 = vmatprep.subr.bf16.mxu0 0
    %276 = vmatpush1.bf16.msra.mxu0 0
    %277 = vmatprep.subr.bf16.mxu0 0
    %278 = vmatpush1.bf16.msra.mxu0 0
    %279 = vmatprep.subr.bf16.mxu0 0
    %280 = vmatpush1.bf16.msra.mxu0 0
    %281 = vmatprep.subr.bf16.mxu0 0
    %282 = vmatpush1.bf16.msra.mxu0 0
    %283 = vmatprep.subr.bf16.mxu0 0
    %284 = vmatpush1.bf16.msra.mxu0 0
    %285 = vmatprep.mubr.bf16.mxu0 0
    %286 = vmatmul.mubr.bf16.gmra.mrb[0].mxu0 %v181
    %v287 = vpop.f32.mrb[0].mxu0
    %v288 = vadd.f32 %v203, %v287
    %v289 = vpop.f32.mrb[0].mxu0
    %v290 = vpop.f32.mrb[0].mxu0
    %v291 = vadd.f32 %v203, %v290
    %v292 = vpop.f32.mrb[0].mxu0
    %293 = vdwg.mxu0
    %294 = vmax.xlane.f32.xlu0 %v288
    %v295 = vpop.xlane.xlu0 %294
    %296 = vmax.xlane.f32.xlu0 %v291
    %v297 = vpop.xlane.xlu0 %296
    %v298 = vsub.f32 %v288, %v295
    %v299 = vsub.f32 %v291, %v297
    %v300 = vmul.f32 %v298, 1.442695
    %v301 = vpow.pop %v300
    %v302 = vmul.f32 %v299, 1.442695
    %v303 = vpow.pop %v302
    %304 = vadd.xlane.f32.xlu0 %v301
    %v305 = vpop.xlane.xlu0 %304
    %306 = vadd.xlane.f32.xlu0 %v303
    %v307 = vpop.xlane.xlu0 %306
    %v308 = vlog2.pop %v305
    %v309 = vmul.f32 %v308, 0.6931472
    %v310 = vlog2.pop %v307
    %v311 = vmul.f32 %v310, 0.6931472
    %v312 = vsub.f32 %v298, %v309
    %v313 = vsub.f32 %v299, %v311
    %314 = vst [vmem:[#allocation7] sm:$0xff] %v312
    %315 = vst [vmem:[#allocation7 + $0x8] sm:$0xff] %v313
    // Predicated region
    $region30: #{tpu_custom_call.1} parent=1 // pred_check
      _
    $region31: #{tpu_custom_call.1} parent=1 // pred_check_branch
      %317 = sbr.rel (0) target = $region33
    $region32: #{tpu_custom_call.1} parent=1 // pred_region
      %s319 = ssub.s32 256, 256
      %320 = vsyncadd [#allocation4], %s319
      %s321 = sshll.u32 [#allocation7], 4
      %s322 = int_to_ptr.vmem [resolvable:$true] %s321
      %327 = dma.vmem_to_hbm [thread:$0]  %s322, 256, %s5, [#allocation4], 128, 128, 8
    $region33: #{tpu_custom_call.1} parent=1 // pred_fallthru
      _
    // Predicated region
    $region34: #{tpu_custom_call.1} parent=1 // pred_check
      _
    $region35: #{tpu_custom_call.1} parent=1 // pred_check_branch
      %329 = sbr.rel (0) target = $region37
    $region36: #{tpu_custom_call.1} parent=1 // pred_region
      %330 = dma.done [#allocation4], 256
    $region37: #{tpu_custom_call.1} parent=1 // pred_fallthru
      _
    %331 = vsyncpa [#allocation3], 1
    %332 = vsyncpa [#allocation6], 1
    %333 = vsyncpa [#allocation4], 1

</llo_original>
